<compile_context>
chip_gen: v7x
topology: tpu7x:2x2x1
jax: 0.10.0
libtpu: 0.0.40
codegen_flags: <defaults>
</compile_context>

<pallas_src>
import functools

import jax
import jax.numpy as jnp
from jax.experimental import pallas as pl
from jax.experimental.pallas import tpu as pltpu

LN_EPS = 1e-5


def _round_up(x, m):
    return ((x + m - 1) // m) * m


# ---------------------------------------------------------------------------
# Fused path: 2x2 gather + LayerNorm(4C) + Linear(4C -> 2Co) in one kernel.
# ---------------------------------------------------------------------------
def _merge_fused_kernel(x_ref, wt_ref, wb_ref, cs_ref, bias_ref, o_ref):
    """x_ref   : (ts, 2, W/2, 2C)  contiguous row-pair strips of the image
       wt_ref  : (2C, 2Co)  gamma-folded weight rows for even image rows [x0|x2]
       wb_ref  : (2C, 2Co)  gamma-folded weight rows for odd  image rows [x1|x3]
       cs_ref  : (1, 2Co)   column sums of the full gamma-folded weight
       bias_ref: (1, 2Co)   beta @ W
       o_ref   : (ts * W/2, 2Co)
    """
    ts, _, w2, two_c = x_ref.shape
    rows = ts * w2

    # Even / odd image rows of each 2-row strip; channel order [x0|x2] / [x1|x3]
    # (the matching weight-row permutation was applied at precompute time).
    top = x_ref[:, 0, :, :].reshape(rows, two_c)
    bot = x_ref[:, 1, :, :].reshape(rows, two_c)

    # LayerNorm statistics over the full 4C channels, in f32 (one-pass).
    tf = top.astype(jnp.float32)
    bf = bot.astype(jnp.float32)
    inv_n = 1.0 / (2.0 * two_c)                       # == 1 / (4*C)
    ssum = (jnp.sum(tf, axis=-1, keepdims=True)
            + jnp.sum(bf, axis=-1, keepdims=True))
    ssq = (jnp.sum(tf * tf, axis=-1, keepdims=True)
           + jnp.sum(bf * bf, axis=-1, keepdims=True))
    mean = ssum * inv_n
    var = ssq * inv_n - mean * mean
    r = jax.lax.rsqrt(var + LN_EPS)

    # MXU matmuls on the raw activations (native dtype), f32 accumulation.
    # Normalization + gamma/beta are applied through r, colsum and bias.
    acc = jnp.dot(top, wt_ref[...], preferred_element_type=jnp.float32)
    acc = acc + jnp.dot(bot, wb_ref[...], preferred_element_type=jnp.float32)
    out = r * acc - (r * mean) * cs_ref[...] + bias_ref[...]
    o_ref[...] = out.astype(o_ref.dtype)


def _pick_strip_tile(num_strips, w2, bytes_per_strip, target_rows):
    """Strips per grid step: big tiles, but keep a few parallel programs and
    stay inside a VMEM budget; returned value divides num_strips."""
    ts = max(1, min(target_rows // max(w2, 1), num_strips))
    if num_strips >= 8 and ts > num_strips // 4:      # keep >= ~4 programs
        ts = max(1, num_strips // 4)
    max_ts = max(1, (12 * 2**20) // max(1, 2 * bytes_per_strip))
    ts = min(ts, max_ts)
    while num_strips % ts:                            # divisor -> no ragged edge
        ts -= 1
    return ts


def _merge_fused(x, w_top, w_bot, colsum, bias, B, H, W, C, two_co, target_rows):
    w2 = W // 2
    two_c = 2 * C
    num_strips = B * (H // 2)
    xr = x.reshape(num_strips, 2, w2, two_c)          # free, contiguous view

    isz = x.dtype.itemsize
    wsz = w_top.dtype.itemsize
    bytes_per_strip = 2 * W * C * isz + w2 * two_co * isz
    ts = _pick_strip_tile(num_strips, w2, bytes_per_strip, target_rows)
    blk_rows = ts * w2
    rows_out = num_strips * w2
    grid = (num_strips // ts,)

    # VMEM budget: double-buffered activation tiles + (double-buffered) weights.
    # NOTE: on v7x (64 MiB VMEM) the resident weight would ideally be
    # single-buffered via pipeline_mode=pl.Buffered(1); kept default here for
    # portability, and the budget below accounts for two copies.
    est_vmem = (2 * ts * bytes_per_strip
                + 2 * 2 * two_c * two_co * wsz
                + 4 * 4 * two_co + (1 << 20))
    vmem_limit = int(min(64 * 2**20, max(32 * 2**20, 2 * est_vmem)))

    cost = pl.CostEstimate(
        flops=2 * rows_out * (4 * C) * two_co,
        transcendentals=rows_out,
        bytes_accessed=(B * H * W * C) * isz + rows_out * two_co * isz
                        + 2 * two_c * two_co * wsz,
    )

    return pl.pallas_call(
        _merge_fused_kernel,
        out_shape=jax.ShapeDtypeStruct((rows_out, two_co), x.dtype),
        grid_spec=pltpu.PrefetchScalarGridSpec(
            num_scalar_prefetch=0,
            grid=grid,
            in_specs=[
                pl.BlockSpec((ts, 2, w2, two_c), lambda i: (i, 0, 0, 0)),
                pl.BlockSpec((two_c, two_co), lambda i: (0, 0)),
                pl.BlockSpec((two_c, two_co), lambda i: (0, 0)),
                pl.BlockSpec((1, two_co), lambda i: (0, 0)),
                pl.BlockSpec((1, two_co), lambda i: (0, 0)),
            ],
            out_specs=pl.BlockSpec((blk_rows, two_co), lambda i: (i, 0)),
        ),
        compiler_params=pltpu.CompilerParams(
            dimension_semantics=("parallel",),
            vmem_limit_bytes=vmem_limit,
        ),
        cost_estimate=cost,
    )(xr, w_top, w_bot, colsum, bias)


# ---------------------------------------------------------------------------
# Fallback path (W/2 not sublane-aligned): gather materialized once, then the
# same fused LN + Linear on a padded (rows, 4C) slab.
# ---------------------------------------------------------------------------
def _merge_fallback_kernel(x_ref, w_ref, cs_ref, bias_ref, o_ref):
    x = x_ref[...]
    xf = x.astype(jnp.float32)
    n = x.shape[-1]
    ssum = jnp.sum(xf, axis=-1, keepdims=True)
    ssq = jnp.sum(xf * xf, axis=-1, keepdims=True)
    mean = ssum * (1.0 / n)
    var = ssq * (1.0 / n) - mean * mean
    r = jax.lax.rsqrt(var + LN_EPS)
    acc = jnp.dot(x, w_ref[...], preferred_element_type=jnp.float32)
    o_ref[...] = (r * acc - (r * mean) * cs_ref[...] + bias_ref[...]).astype(o_ref.dtype)


def _merge_fallback(x, wp, colsum, bias, B, H, W, C, two_co, target_rows):
    xv = x.reshape(B, H, W, C)
    xc = jnp.concatenate(
        [xv[:, 0::2, 0::2, :], xv[:, 1::2, 0::2, :],
         xv[:, 0::2, 1::2, :], xv[:, 1::2, 1::2, :]], axis=-1)
    rows = B * (H // 2) * (W // 2)
    x2d = xc.reshape(rows, 4 * C)

    tm = _round_up(min(max(target_rows, 8), rows), 8)
    padded = _round_up(rows, tm)
    if padded != rows:                                # pad instead of asserting
        x2d = jnp.pad(x2d, ((0, padded - rows), (0, 0)))

    out = pl.pallas_call(
        _merge_fallback_kernel,
        out_shape=jax.ShapeDtypeStruct((padded, two_co), x.dtype),
        grid_spec=pltpu.PrefetchScalarGridSpec(
            num_scalar_prefetch=0,
            grid=(padded // tm,),
            in_specs=[
                pl.BlockSpec((tm, 4 * C), lambda i: (i, 0)),
                pl.BlockSpec((4 * C, two_co), lambda i: (0, 0)),
                pl.BlockSpec((1, two_co), lambda i: (0, 0)),
                pl.BlockSpec((1, two_co), lambda i: (0, 0)),
            ],
            out_specs=pl.BlockSpec((tm, two_co), lambda i: (i, 0)),
        ),
        compiler_params=pltpu.CompilerParams(
            dimension_semantics=("parallel",),
            vmem_limit_bytes=64 * 2**20,
        ),
    )(x2d, wp, colsum, bias)
    return out[:rows]


# ---------------------------------------------------------------------------
# Public forward + params
# ---------------------------------------------------------------------------
def patch_merging(x, params, input_resolution, *, target_rows=512):
    """PatchMerging forward: x (B, H*W, C) -> (B, (H/2)*(W/2), 2*C)."""
    H, W = input_resolution
    B, L, C = x.shape
    assert L == H * W, "input feature has wrong size"
    assert H % 2 == 0 and W % 2 == 0, f"x size ({H}*{W}) are not even."

    w_t = params["w_reduction_t"]                     # (4C, 2Co) = Linear.weight.T
    two_co = w_t.shape[1]
    gamma = params["ln_gamma"].reshape(-1).astype(jnp.float32)   # (4C,)
    beta = params["ln_beta"].reshape(-1).astype(jnp.float32)     # (4C,)

    # Fold LayerNorm affine into the projection (tiny precompute, outside kernel).
    w32 = w_t.astype(jnp.float32)
    wp32 = gamma[:, None] * w32                       # gamma-folded weight
    colsum = jnp.sum(wp32, axis=0, keepdims=True)     # (1, 2Co), f32
    bias = beta[None, :] @ w32                        # (1, 2Co), f32

    mm_dtype = jnp.bfloat16 if x.dtype == jnp.bfloat16 else jnp.float32
    wp = wp32.astype(mm_dtype)

    w2 = W // 2
    sublanes = 8 * max(1, 4 // x.dtype.itemsize)      # 8 (f32) / 16 (bf16) / 32 (i8)
    if w2 % sublanes == 0:
        # Permute weight rows to match the in-kernel [x0|x2] / [x1|x3] layout.
        w_top = jnp.concatenate([wp[0:C], wp[2 * C:3 * C]], axis=0)
        w_bot = jnp.concatenate([wp[C:2 * C], wp[3 * C:4 * C]], axis=0)
        out2d = _merge_fused(x, w_top, w_bot, colsum, bias,
                             B, H, W, C, two_co, target_rows)
    else:
        # TODO(synk): generalize the fused-gather path to W/2 values that are not
        # sublane aligned (needs an unaligned in-kernel collapse reshape).
        out2d = _merge_fallback(x, wp, colsum, bias,
                                B, H, W, C, two_co, target_rows)
    return out2d.reshape(B, (H // 2) * (W // 2), two_co)


def init_params(key, dim, dtype=jnp.float32):
    """Synthetic params matching nn.Linear(4d, 2d, bias=False) + nn.LayerNorm(4d)."""
    k_w, k_g, k_b = jax.random.split(key, 3)
    w = jax.random.normal(k_w, (2 * dim, 4 * dim), dtype) * 0.02   # PyTorch (out, in)
    gamma = 1.0 + 0.1 * jax.random.normal(k_g, (4 * dim,), dtype)
    beta = 0.1 * jax.random.normal(k_b, (4 * dim,), dtype)
    return {"w_reduction_t": w.T, "ln_gamma": gamma, "ln_beta": beta}


def _reference(x, params, input_resolution):
    """Plain-JAX reference for correctness check."""
    H, W = input_resolution
    B, L, C = x.shape
    xv = x.reshape(B, H, W, C)
    xc = jnp.concatenate(
        [xv[:, 0::2, 0::2, :], xv[:, 1::2, 0::2, :],
         xv[:, 0::2, 1::2, :], xv[:, 1::2, 1::2, :]], axis=-1
    ).reshape(B, -1, 4 * C)
    mean = jnp.mean(xc, axis=-1, keepdims=True)
    var = jnp.mean((xc - mean) ** 2, axis=-1, keepdims=True)
    xn = (xc - mean) / jnp.sqrt(var + LN_EPS)
    xn = xn * params["ln_gamma"] + params["ln_beta"]
    return xn @ params["w_reduction_t"]


if __name__ == "__main__":
    key = jax.random.PRNGKey(0)
    k_x, k_p, k_x2, k_p2 = jax.random.split(key, 4)

    # Tolerance note: the kernel applies normalization *after* the MXU matmul
    # (out = r*(x@W') - r*m*colsum + bias), so default-precision TPU matmul
    # rounding differs slightly from the plain-JAX reference ordering.
    ATOL = RTOL = 1e-2

    # --- Primary check: fused-gather path (W/2 is sublane aligned) ----------
    B, H, W, C = 2, 16, 16, 64
    x = jax.random.normal(k_x, (B, H * W, C), jnp.float32)
    params = init_params(k_p, C)
    fn = jax.jit(functools.partial(patch_merging, input_resolution=(H, W)))
    out = fn(x, params)
    jax.block_until_ready(out)
    ref = _reference(x, params, (H, W))
    assert out.shape == (B, (H // 2) * (W // 2), 2 * C), out.shape
    assert jnp.allclose(out, ref, atol=ATOL, rtol=RTOL), (
        "fused mismatch, max abs err = %e" % float(jnp.max(jnp.abs(out - ref))))

    # --- Secondary check: fallback path (W/2 not a multiple of 8) -----------
    B2, H2, W2, C2 = 2, 8, 8, 32
    x2 = jax.random.normal(k_x2, (B2, H2 * W2, C2), jnp.float32)
    params2 = init_params(k_p2, C2)
    fn2 = jax.jit(functools.partial(patch_merging, input_resolution=(H2, W2)))
    out2 = fn2(x2, params2)
    jax.block_until_ready(out2)
    ref2 = _reference(x2, params2, (H2, W2))
    assert out2.shape == (B2, (H2 // 2) * (W2 // 2), 2 * C2), out2.shape
    assert jnp.allclose(out2, ref2, atol=ATOL, rtol=RTOL), (
        "fallback mismatch, max abs err = %e" % float(jnp.max(jnp.abs(out2 - ref2))))

    print("KERNEL_OK")
</pallas_src>

<mosaic_0001>
module attributes {stable_mosaic.version = 11 : i64} {
  func.func @_merge_fused_kernel(%arg0: i32, %arg1: memref<4x2x8x128xf32, #tpu.memory_space<vmem>>, %arg2: memref<128x128xf32, #tpu.memory_space<vmem>>, %arg3: memref<128x128xf32, #tpu.memory_space<vmem>>, %arg4: memref<1x128xf32, #tpu.memory_space<vmem>>, %arg5: memref<1x128xf32, #tpu.memory_space<vmem>>, %arg6: memref<32x128xf32, #tpu.memory_space<vmem>>) attributes {dimension_semantics = [#tpu.dimension_semantics<parallel>], iteration_bounds = array<i64: 4>, scalar_prefetch = 0 : i64, scratch_operands = 0 : i64, tpu.core_type = #tpu.core_type<tc>, window_params = [{transform_indices = @transform_0, window_bounds = array<i64: 4, 2, 8, 128>}, {pipeline_mode = #tpu.pipeline_mode<synchronous>, transform_indices = @transform_1, window_bounds = array<i64: 128, 128>}, {pipeline_mode = #tpu.pipeline_mode<synchronous>, transform_indices = @transform_2, window_bounds = array<i64: 128, 128>}, {pipeline_mode = #tpu.pipeline_mode<synchronous>, transform_indices = @transform_3, window_bounds = array<i64: 1, 128>}, {pipeline_mode = #tpu.pipeline_mode<synchronous>, transform_indices = @transform_4, window_bounds = array<i64: 1, 128>}, {transform_indices = @transform_5, window_bounds = array<i64: 32, 128>}]} {
    %c0 = arith.constant 0 : index
    %c0_0 = arith.constant 0 : index
    %c0_1 = arith.constant 0 : index
    %c0_2 = arith.constant 0 : index
    %0 = vector.load %arg1[%c0, %c0_0, %c0_1, %c0_2] : memref<4x2x8x128xf32, #tpu.memory_space<vmem>>, vector<4x1x8x128xf32>
    %1 = vector.shape_cast %0 : vector<4x1x8x128xf32> to vector<4x8x128xf32>
    %2 = vector.shape_cast %1 : vector<4x8x128xf32> to vector<32x128xf32>
    %c0_3 = arith.constant 0 : index
    %c1 = arith.constant 1 : index
    %c0_4 = arith.constant 0 : index
    %c0_5 = arith.constant 0 : index
    %3 = vector.load %arg1[%c0_3, %c1, %c0_4, %c0_5] : memref<4x2x8x128xf32, #tpu.memory_space<vmem>>, vector<4x1x8x128xf32>
    %4 = vector.shape_cast %3 : vector<4x1x8x128xf32> to vector<4x8x128xf32>
    %5 = vector.shape_cast %4 : vector<4x8x128xf32> to vector<32x128xf32>
    %cst = arith.constant dense<0.000000e+00> : vector<32xf32>
    %6 = vector.multi_reduction <add>, %2, %cst [1] : vector<32x128xf32> to vector<32xf32>
    %7 = vector.shape_cast %6 : vector<32xf32> to vector<32x1xf32>
    %cst_6 = arith.constant dense<0.000000e+00> : vector<32xf32>
    %8 = vector.multi_reduction <add>, %5, %cst_6 [1] : vector<32x128xf32> to vector<32xf32>
    %9 = vector.shape_cast %8 : vector<32xf32> to vector<32x1xf32>
    %10 = arith.addf %7, %9 : vector<32x1xf32>
    %11 = arith.mulf %2, %2 : vector<32x128xf32>
    %cst_7 = arith.constant dense<0.000000e+00> : vector<32xf32>
    %12 = vector.multi_reduction <add>, %11, %cst_7 [1] : vector<32x128xf32> to vector<32xf32>
    %13 = vector.shape_cast %12 : vector<32xf32> to vector<32x1xf32>
    %14 = arith.mulf %5, %5 : vector<32x128xf32>
    %cst_8 = arith.constant dense<0.000000e+00> : vector<32xf32>
    %15 = vector.multi_reduction <add>, %14, %cst_8 [1] : vector<32x128xf32> to vector<32xf32>
    %16 = vector.shape_cast %15 : vector<32xf32> to vector<32x1xf32>
    %17 = arith.addf %13, %16 : vector<32x1xf32>
    %cst_9 = arith.constant 3.906250e-03 : f32
    %18 = vector.broadcast %cst_9 : f32 to vector<32x1xf32>
    %19 = arith.mulf %10, %18 : vector<32x1xf32>
    %cst_10 = arith.constant 3.906250e-03 : f32
    %20 = vector.broadcast %cst_10 : f32 to vector<32x1xf32>
    %21 = arith.mulf %17, %20 : vector<32x1xf32>
    %22 = arith.mulf %19, %19 : vector<32x1xf32>
    %23 = arith.subf %21, %22 : vector<32x1xf32>
    %cst_11 = arith.constant 9.99999974E-6 : f32
    %24 = vector.broadcast %cst_11 : f32 to vector<32x1xf32>
    %25 = arith.addf %23, %24 : vector<32x1xf32>
    %26 = math.rsqrt %25 : vector<32x1xf32>
    %c0_12 = arith.constant 0 : index
    %c0_13 = arith.constant 0 : index
    %27 = vector.load %arg2[%c0_12, %c0_13] : memref<128x128xf32, #tpu.memory_space<vmem>>, vector<128x128xf32>
    %cst_14 = arith.constant dense<0.000000e+00> : vector<32x128xf32>
    %28 = tpu.matmul %2, %27, %cst_14 {dimension_numbers = #tpu.dot_dimension_numbers<[1], [0], [0], [1], [0, 0, 1, 1], [], []>} : vector<32x128xf32>, vector<128x128xf32>, vector<32x128xf32> -> vector<32x128xf32>
    %c0_15 = arith.constant 0 : index
    %c0_16 = arith.constant 0 : index
    %29 = vector.load %arg3[%c0_15, %c0_16] : memref<128x128xf32, #tpu.memory_space<vmem>>, vector<128x128xf32>
    %cst_17 = arith.constant dense<0.000000e+00> : vector<32x128xf32>
    %30 = tpu.matmul %5, %29, %cst_17 {dimension_numbers = #tpu.dot_dimension_numbers<[1], [0], [0], [1], [0, 0, 1, 1], [], []>} : vector<32x128xf32>, vector<128x128xf32>, vector<32x128xf32> -> vector<32x128xf32>
    %31 = arith.addf %28, %30 : vector<32x128xf32>
    %32 = vector.broadcast %26 : vector<32x1xf32> to vector<32x128xf32>
    %33 = arith.mulf %32, %31 : vector<32x128xf32>
    %34 = arith.mulf %26, %19 : vector<32x1xf32>
    %c0_18 = arith.constant 0 : index
    %c0_19 = arith.constant 0 : index
    %35 = vector.load %arg4[%c0_18, %c0_19] : memref<1x128xf32, #tpu.memory_space<vmem>>, vector<1x128xf32>
    %36 = vector.broadcast %34 : vector<32x1xf32> to vector<32x128xf32>
    %37 = vector.broadcast %35 : vector<1x128xf32> to vector<32x128xf32>
    %38 = arith.mulf %36, %37 : vector<32x128xf32>
    %39 = arith.subf %33, %38 : vector<32x128xf32>
    %c0_20 = arith.constant 0 : index
    %c0_21 = arith.constant 0 : index
    %40 = vector.load %arg5[%c0_20, %c0_21] : memref<1x128xf32, #tpu.memory_space<vmem>>, vector<1x128xf32>
    %41 = vector.broadcast %40 : vector<1x128xf32> to vector<32x128xf32>
    %42 = arith.addf %39, %41 : vector<32x128xf32>
    %c0_22 = arith.constant 0 : index
    %c0_23 = arith.constant 0 : index
    %43 = vector.load %arg6[%c0_22, %c0_23] : memref<32x128xf32, #tpu.memory_space<vmem>>, vector<32x128xf32>
    tpu.vector_store %arg6[%c0_22, %c0_23], %42 {strides = array<i32>} : memref<32x128xf32, #tpu.memory_space<vmem>>, vector<32x128xf32>,
    return
  }
  func.func @transform_0(%arg0: i32) -> (i32, i32, i32, i32) {
    %c0_i32 = arith.constant 0 : i32
    %c0_i32_0 = arith.constant 0 : i32
    %c0_i32_1 = arith.constant 0 : i32
    %c0_i32_2 = arith.constant 0 : i32
    return %arg0, %c0_i32, %c0_i32_0, %c0_i32_1 : i32, i32, i32, i32
  }
  func.func @transform_1(%arg0: i32) -> (i32, i32) {
    %c0_i32 = arith.constant 0 : i32
    %c0_i32_0 = arith.constant 0 : i32
    %c0_i32_1 = arith.constant 0 : i32
    return %c0_i32, %c0_i32_0 : i32, i32
  }
  func.func @transform_2(%arg0: i32) -> (i32, i32) {
    %c0_i32 = arith.constant 0 : i32
    %c0_i32_0 = arith.constant 0 : i32
    %c0_i32_1 = arith.constant 0 : i32
    return %c0_i32, %c0_i32_0 : i32, i32
  }
  func.func @transform_3(%arg0: i32) -> (i32, i32) {
    %c0_i32 = arith.constant 0 : i32
    %c0_i32_0 = arith.constant 0 : i32
    %c0_i32_1 = arith.constant 0 : i32
    return %c0_i32, %c0_i32_0 : i32, i32
  }
  func.func @transform_4(%arg0: i32) -> (i32, i32) {
    %c0_i32 = arith.constant 0 : i32
    %c0_i32_0 = arith.constant 0 : i32
    %c0_i32_1 = arith.constant 0 : i32
    return %c0_i32, %c0_i32_0 : i32, i32
  }
  func.func @transform_5(%arg0: i32) -> (i32, i32) {
    %c0_i32 = arith.constant 0 : i32
    %c0_i32_0 = arith.constant 0 : i32
    return %arg0, %c0_i32 : i32, i32
  }
}

</mosaic_0001>

<llo_original>
// kernel: patch_merging.1
$region0: #{patch_merging.1}
  #allocation0 [shape = 'u32[]', space=smem, size = 0x4, offset = 0x4, fixed_abs, tag = 'smem constant byte address 0x4 - core index']
  #allocation1 [shape = 'u32[144,128]{1,0:T(1,128)}', space=vmem, size = 0x12000, scoped, tag = 'internal scratch']
  %s0 = inlined_call_operand.vmem [shape: f32[16,2,8,128], index: 0, kind: input, shape index: {}]
  %s1 = inlined_call_operand.vmem [shape: f32[128,128], index: 1, kind: input, shape index: {}]
  %s2 = inlined_call_operand.vmem [shape: f32[128,128], index: 2, kind: input, shape index: {}]
  %s3 = inlined_call_operand.vmem [shape: f32[1,128], index: 3, kind: input, shape index: {}]
  %s4 = inlined_call_operand.vmem [shape: f32[1,128], index: 4, kind: input, shape index: {}]
  %s5 = inlined_call_operand.hbm [shape: f32[128,128], index: 5, kind: output, shape index: {}]
  %s6 = sld [smem:[#allocation0]]
  $region53: #{patch_merging.1} parent=0
    _
  %s8 = ssub.s32 1, %s6
  %s9 = scalar_select 0, %s8, %s6
  $region1: #{patch_merging.1} parent=0
    #allocation2 [shape = 'u8[32768]{0}', space=vmem, size = 0x8000, scoped, tag = 'output window, operand 0']
    #allocation3 [shape = 's32[2]{0}', space=sflag, size = 0x8, scoped, tag = 'scoped memory for patch_merging.1']
    %10 = vsyncpa [#allocation3], 0
    %s11 = scalar_lea.sflag [#allocation3], 1
    %12 = vsyncpa %s11, 0
    loop: start=0, step=1, limit=6
    $region2: #{patch_merging.1} parent=1 // loop_pre_header
      _
    $region3: #{patch_merging.1} parent=1 // loop_header
      %s14 = sphi 0, %s18
      %p15 = scmp.ge.s32.totalorder %s14, 6
      %s24 = sphi 0, %s26
      %s27 = sphi 0, %s24
      %s28 = sphi 0, %s27
      %s44 = sphi 0, %s28
      %s48 = sphi 0, %s48
      %s50 = sphi 0, %s48
      %s51 = sphi 0, %s50
      %s65 = sphi 0, %s51
      %s69 = sphi 0, %s69
      %s71 = sphi 0, %s69
      %s72 = sphi 0, %s71
      %s86 = sphi 0, %s72
      %s90 = sphi 0, %s90
      %s92 = sphi 0, %s90
      %s93 = sphi 0, %s92
      %s107 = sphi 0, %s93
      %s111 = sphi 0, %s111
      %s113 = sphi 0, %s111
      %s114 = sphi 0, %s113
      %s128 = sphi 0, %s114
      %s134 = sphi 0, %s136
      %s137 = sphi 0, %s134
      %s138 = sphi 0, %s137
      %s154 = sphi 0, %s138
    $region4: #{patch_merging.1} parent=1 // loop_header_branch
      %17 = sbr.rel (%p15) target = $region8
    $region5: #{patch_merging.1} parent=1 // loop_body
      %s19 = ssub.s32 %s14, 1
      %s20 = ssub.s32 %s14, 2
      %s21 = sadd.s32 %s14, 1
      %s22 = ssub.s32 %s14, %s21
      %p23 = scmp.eq.s32.totalorder %s22, 0
      %s25 = sadd.s32 %s24, 1
      %s26 = scalar_select %p23, %s24, %s25
      %p29 = pneg %p23
      %p30 = scmp.eq.s32.totalorder %s14, 3
      %p31 = por %p29, %p30
      %p32 = scmp.ne.s32.totalorder %s24, %s27
      %p33 = scmp.eq.s32.totalorder %s14, 0
      %p34 = por %p32, %p33
      %p35 = scmp.ne.s32.totalorder %s24, %s27
      %p36 = scmp.eq.s32.totalorder %s19, 3
      %p37 = por %p35, %p36
      %p38 = scmp.ne.s32.totalorder %s27, %s28
      %p39 = scmp.eq.s32.totalorder %s19, 0
      %p40 = por %p38, %p39
      %p41 = scmp.ne.s32.totalorder %s27, %s28
      %p42 = scmp.eq.s32.totalorder %s20, 3
      %p43 = por %p41, %p42
      %p45 = scmp.ne.s32.totalorder %s28, %s44
      %p46 = scmp.eq.s32.totalorder %s20, 0
      %p47 = por %p45, %p46
      %s49 = sadd.s32 %s48, 1
      %p52 = scmp.eq.s32.totalorder %s14, 3
      %p53 = scmp.ne.s32.totalorder %s48, %s50
      %p54 = scmp.eq.s32.totalorder %s14, 0
      %p55 = por %p53, %p54
      %p56 = scmp.ne.s32.totalorder %s48, %s50
      %p57 = scmp.eq.s32.totalorder %s19, 3
      %p58 = por %p56, %p57
      %p59 = scmp.ne.s32.totalorder %s50, %s51
      %p60 = scmp.eq.s32.totalorder %s19, 0
      %p61 = por %p59, %p60
      %p62 = scmp.ne.s32.totalorder %s50, %s51
      %p63 = scmp.eq.s32.totalorder %s20, 3
      %p64 = por %p62, %p63
      %p66 = scmp.ne.s32.totalorder %s51, %s65
      %p67 = scmp.eq.s32.totalorder %s20, 0
      %p68 = por %p66, %p67
      %s70 = sadd.s32 %s69, 1
      %p73 = scmp.eq.s32.totalorder %s14, 3
      %p74 = scmp.ne.s32.totalorder %s69, %s71
      %p75 = scmp.eq.s32.totalorder %s14, 0
      %p76 = por %p74, %p75
      %p77 = scmp.ne.s32.totalorder %s69, %s71
      %p78 = scmp.eq.s32.totalorder %s19, 3
      %p79 = por %p77, %p78
      %p80 = scmp.ne.s32.totalorder %s71, %s72
      %p81 = scmp.eq.s32.totalorder %s19, 0
      %p82 = por %p80, %p81
      %p83 = scmp.ne.s32.totalorder %s71, %s72
      %p84 = scmp.eq.s32.totalorder %s20, 3
      %p85 = por %p83, %p84
      %p87 = scmp.ne.s32.totalorder %s72, %s86
      %p88 = scmp.eq.s32.totalorder %s20, 0
      %p89 = por %p87, %p88
      %s91 = sadd.s32 %s90, 1
      %p94 = scmp.eq.s32.totalorder %s14, 3
      %p95 = scmp.ne.s32.totalorder %s90, %s92
      %p96 = scmp.eq.s32.totalorder %s14, 0
      %p97 = por %p95, %p96
      %p98 = scmp.ne.s32.totalorder %s90, %s92
      %p99 = scmp.eq.s32.totalorder %s19, 3
      %p100 = por %p98, %p99
      %p101 = scmp.ne.s32.totalorder %s92, %s93
      %p102 = scmp.eq.s32.totalorder %s19, 0
      %p103 = por %p101, %p102
      %p104 = scmp.ne.s32.totalorder %s92, %s93
      %p105 = scmp.eq.s32.totalorder %s20, 3
      %p106 = por %p104, %p105
      %p108 = scmp.ne.s32.totalorder %s93, %s107
      %p109 = scmp.eq.s32.totalorder %s20, 0
      %p110 = por %p108, %p109
      %s112 = sadd.s32 %s111, 1
      %p115 = scmp.eq.s32.totalorder %s14, 3
      %p116 = scmp.ne.s32.totalorder %s111, %s113
      %p117 = scmp.eq.s32.totalorder %s14, 0
      %p118 = por %p116, %p117
      %p119 = scmp.ne.s32.totalorder %s111, %s113
      %p120 = scmp.eq.s32.totalorder %s19, 3
      %p121 = por %p119, %p120
      %p122 = scmp.ne.s32.totalorder %s113, %s114
      %p123 = scmp.eq.s32.totalorder %s19, 0
      %p124 = por %p122, %p123
      %p125 = scmp.ne.s32.totalorder %s113, %s114
      %p126 = scmp.eq.s32.totalorder %s20, 3
      %p127 = por %p125, %p126
      %p129 = scmp.ne.s32.totalorder %s114, %s128
      %p130 = scmp.eq.s32.totalorder %s20, 0
      %p131 = por %p129, %p130
      %s132 = ssub.s32 %s14, %s21
      %p133 = scmp.eq.s32.totalorder %s132, 0
      %s135 = sadd.s32 %s134, 1
      %s136 = scalar_select %p133, %s134, %s135
      %p139 = pneg %p133
      %p140 = scmp.eq.s32.totalorder %s14, 3
      %p141 = por %p139, %p140
      %p142 = scmp.ne.s32.totalorder %s134, %s137
      %p143 = scmp.eq.s32.totalorder %s14, 0
      %p144 = por %p142, %p143
      %p145 = scmp.ne.s32.totalorder %s134, %s137
      %p146 = scmp.eq.s32.totalorder %s19, 3
      %p147 = por %p145, %p146
      %p148 = scmp.ne.s32.totalorder %s137, %s138
      %p149 = scmp.eq.s32.totalorder %s19, 0
      %p150 = por %p148, %p149
      %p151 = scmp.ne.s32.totalorder %s137, %s138
      %p152 = scmp.eq.s32.totalorder %s20, 3
      %p153 = por %p151, %p152
      %p155 = scmp.ne.s32.totalorder %s138, %s154
      %p156 = scmp.eq.s32.totalorder %s20, 0
      %p157 = por %p155, %p156
      %p158 = scmp.le.s32.totalorder 1, %s14
      %p159 = scmp.lt.s32.totalorder %s14, 5
      %p160 = pnand %p158, %p159
      %p161 = pneg %p160
      // Predicated region
      $region9: #{patch_merging.1} parent=5 // pred_check
        _
      $region10: #{patch_merging.1} parent=5 // pred_check_branch
        %163 = sbr.rel (%p160) target = $region12
      $region11: #{patch_merging.1} parent=5 // pred_region
        %s164 = ssub.s32 %s14, 1
        // Predicated region
        $region13: #{patch_merging.1} parent=11 // pred_check
          %p165 = pneg %p61
        $region14: #{patch_merging.1} parent=11 // pred_check_branch
          %167 = sbr.rel (%p165) target = $region16
        $region15: #{patch_merging.1} parent=11 // pred_region
          _
        $region16: #{patch_merging.1} parent=11 // pred_fallthru
          _
        // Predicated region
        $region17: #{patch_merging.1} parent=11 // pred_check
          %p168 = pneg %p82
        $region18: #{patch_merging.1} parent=11 // pred_check_branch
          %170 = sbr.rel (%p168) target = $region20
        $region19: #{patch_merging.1} parent=11 // pred_region
          _
        $region20: #{patch_merging.1} parent=11 // pred_fallthru
          _
        // Predicated region
        $region21: #{patch_merging.1} parent=11 // pred_check
          %p171 = pneg %p103
        $region22: #{patch_merging.1} parent=11 // pred_check_branch
          %173 = sbr.rel (%p171) target = $region24
        $region23: #{patch_merging.1} parent=11 // pred_region
          _
        $region24: #{patch_merging.1} parent=11 // pred_fallthru
          _
        // Predicated region
        $region25: #{patch_merging.1} parent=11 // pred_check
          %p174 = pneg %p124
        $region26: #{patch_merging.1} parent=11 // pred_check_branch
          %176 = sbr.rel (%p174) target = $region28
        $region27: #{patch_merging.1} parent=11 // pred_region
          _
        $region28: #{patch_merging.1} parent=11 // pred_fallthru
          _
      $region12: #{patch_merging.1} parent=5 // pred_fallthru
        _
      %p177 = scmp.lt.s32.totalorder %s14, 4
      // Predicated region
      $region29: #{patch_merging.1} parent=5 // pred_check
        %p178 = pneg %p177
      $region30: #{patch_merging.1} parent=5 // pred_check_branch
        %180 = sbr.rel (%p178) target = $region32
      $region31: #{patch_merging.1} parent=5 // pred_region
        // Predicated region
        $region33: #{patch_merging.1} parent=31 // pred_check
          %p181 = pneg %p34
        $region34: #{patch_merging.1} parent=31 // pred_check_branch
          %183 = sbr.rel (%p181) target = $region36
        $region35: #{patch_merging.1} parent=31 // pred_region
          %s184 = smul.u32 4, %s14
          %p185 = scmp.lt.s32.totalorder %s184, 15
          %s186 = scalar_select %p185, %s184, 15
          %s187 = smul.addr %s186, 2
          %s188 = smul.addr %s187, 8
          %s189 = scalar_lea.vmem %s0, %s188
          %s190 = smul.u32 4, %s14
        $region36: #{patch_merging.1} parent=31 // pred_fallthru
          _
      $region32: #{patch_merging.1} parent=5 // pred_fallthru
        _
      %p191 = scmp.le.s32.totalorder 1, %s14
      %p192 = scmp.lt.s32.totalorder %s14, 5
      %p193 = pnand %p191, %p192
      %p194 = pneg %p193
      // Predicated region
      $region37: #{patch_merging.1} parent=5 // pred_check
        _
      $region38: #{patch_merging.1} parent=5 // pred_check_branch
        %196 = sbr.rel (%p193) target = $region40
      $region39: #{patch_merging.1} parent=5 // pred_region
        %s197 = ssub.s32 %s14, 1
        %s198 = smul.u32 4, %s19
        %p199 = scmp.lt.s32.totalorder %s198, 15
        %s200 = scalar_select %p199, %s198, 15
        %s201 = smul.addr %s200, 2
        %s202 = smul.addr %s201, 8
        %s203 = scalar_lea.vmem %s0, %s202
        %p204 = pneg %p40
        %p205 = pneg %p37
        %p206 = pneg %p61
        %p207 = pneg %p58
        %p208 = pneg %p82
        %p209 = pneg %p79
        %p210 = pneg %p103
        %p211 = pneg %p100
        %p212 = pneg %p124
        %p213 = pneg %p121
        %p214 = pneg %p150
        %p215 = pneg %p147
        %s216 = sand.u32 %s137, 1
        %s217 = scalar_lea.sflag [#allocation3], %s216
        %s218 = sand.u32 %s137, 1
        %s219 = smul.addr %s218, 32
        %s220 = scalar_lea.vmem [#allocation2], %s219
        %s221 = smul.u32 4, %s19
        %p222 = scmp.lt.s32.totalorder %s221, 15
        %s223 = scalar_select %p222, %s221, 15
        %s224 = smul.addr %s223, 2
        %s225 = smul.addr %s224, 8
        %s226 = scalar_lea.vmem %s0, %s225
        %s227 = smul.u32 4, %s19
        %s228 = smul.u32 4, %s19
        %v229 = vld [vmem:[%s226] sm:$0xff]
        %v230 = vld [vmem:[%s226 + $0x10] sm:$0xff]
        %v231 = vld [vmem:[%s226 + $0x20] sm:$0xff]
        %v232 = vld [vmem:[%s226 + $0x30] sm:$0xff]
        %s233 = scalar_lea.vmem %s226, 8
        %v234 = vld [vmem:[%s233] sm:$0xff]
        %v235 = vld [vmem:[%s233 + $0x10] sm:$0xff]
        %v236 = vld [vmem:[%s233 + $0x20] sm:$0xff]
        %v237 = vld [vmem:[%s233 + $0x30] sm:$0xff]
        %238 = vadd.xlane.f32.xlu0 %v229
        %v239 = vpop.xlane.xlu0 %238
        %240 = vadd.xlane.f32.xlu0 %v230
        %v241 = vpop.xlane.xlu0 %240
        %242 = vadd.xlane.f32.xlu0 %v231
        %v243 = vpop.xlane.xlu0 %242
        %244 = vadd.xlane.f32.xlu0 %v232
        %v245 = vpop.xlane.xlu0 %244
        %246 = vadd.xlane.f32.xlu0 %v234
        %v247 = vpop.xlane.xlu0 %246
        %248 = vadd.xlane.f32.xlu0 %v235
        %v249 = vpop.xlane.xlu0 %248
        %250 = vadd.xlane.f32.xlu0 %v236
        %v251 = vpop.xlane.xlu0 %250
        %252 = vadd.xlane.f32.xlu0 %v237
        %v253 = vpop.xlane.xlu0 %252
        %v254 = vadd.f32 %v239, %v247
        %v255 = vadd.f32 %v241, %v249
        %v256 = vadd.f32 %v243, %v251
        %v257 = vadd.f32 %v245, %v253
        %v258 = vmul.f32 %v229, %v229
        %v259 = vmul.f32 %v230, %v230
        %v260 = vmul.f32 %v231, %v231
        %v261 = vmul.f32 %v232, %v232
        %262 = vadd.xlane.f32.xlu0 %v258
        %v263 = vpop.xlane.xlu0 %262
        %264 = vadd.xlane.f32.xlu0 %v259
        %v265 = vpop.xlane.xlu0 %264
        %266 = vadd.xlane.f32.xlu0 %v260
        %v267 = vpop.xlane.xlu0 %266
        %268 = vadd.xlane.f32.xlu0 %v261
        %v269 = vpop.xlane.xlu0 %268
        %v270 = vmul.f32 %v234, %v234
        %v271 = vmul.f32 %v235, %v235
        %v272 = vmul.f32 %v236, %v236
        %v273 = vmul.f32 %v237, %v237
        %274 = vadd.xlane.f32.xlu0 %v270
        %v275 = vpop.xlane.xlu0 %274
        %276 = vadd.xlane.f32.xlu0 %v271
        %v277 = vpop.xlane.xlu0 %276
        %278 = vadd.xlane.f32.xlu0 %v272
        %v279 = vpop.xlane.xlu0 %278
        %280 = vadd.xlane.f32.xlu0 %v273
        %v281 = vpop.xlane.xlu0 %280
        %v282 = vadd.f32 %v263, %v275
        %v283 = vadd.f32 %v265, %v277
        %v284 = vadd.f32 %v267, %v279
        %v285 = vadd.f32 %v269, %v281
        %v286 = vmul.f32 %v254, 0.00390625
        %v287 = vmul.f32 %v255, 0.00390625
        %v288 = vmul.f32 %v256, 0.00390625
        %v289 = vmul.f32 %v257, 0.00390625
        %v290 = vmul.f32 %v282, 0.00390625
        %v291 = vmul.f32 %v283, 0.00390625
        %v292 = vmul.f32 %v284, 0.00390625
        %v293 = vmul.f32 %v285, 0.00390625
        %v294 = vmul.f32 %v286, %v286
        %v295 = vmul.f32 %v287, %v287
        %v296 = vmul.f32 %v288, %v288
        %v297 = vmul.f32 %v289, %v289
        %v298 = vsub.f32 %v290, %v294
        %v299 = vsub.f32 %v291, %v295
        %v300 = vsub.f32 %v292, %v296
        %v301 = vsub.f32 %v293, %v297
        %v302 = vadd.f32 %v298, 1e-05
        %v303 = vadd.f32 %v299, 1e-05
        %v304 = vadd.f32 %v300, 1e-05
        %v305 = vadd.f32 %v301, 1e-05
        %v306 = vrsqrt.pop %v302
        %v307 = vrsqrt.pop %v303
        %v308 = vrsqrt.pop %v304
        %v309 = vrsqrt.pop %v305
        %v310 = vld [vmem:[%s1] sm:$0xff]
        %v311 = vld [vmem:[%s1 + $0x8] sm:$0xff]
        %v312 = vld [vmem:[%s1 + $0x10] sm:$0xff]
        %v313 = vld [vmem:[%s1 + $0x18] sm:$0xff]
        %v314 = vld [vmem:[%s1 + $0x20] sm:$0xff]
        %v315 = vld [vmem:[%s1 + $0x28] sm:$0xff]
        %v316 = vld [vmem:[%s1 + $0x30] sm:$0xff]
        %v317 = vld [vmem:[%s1 + $0x38] sm:$0xff]
        %v318 = vld [vmem:[%s1 + $0x40] sm:$0xff]
        %v319 = vld [vmem:[%s1 + $0x48] sm:$0xff]
        %v320 = vld [vmem:[%s1 + $0x50] sm:$0xff]
        %v321 = vld [vmem:[%s1 + $0x58] sm:$0xff]
        %v322 = vld [vmem:[%s1 + $0x60] sm:$0xff]
        %v323 = vld [vmem:[%s1 + $0x68] sm:$0xff]
        %v324 = vld [vmem:[%s1 + $0x70] sm:$0xff]
        %v325 = vld [vmem:[%s1 + $0x78] sm:$0xff]
        %v326 = vld [vmem:[%s2] sm:$0xff]
        %v327 = vld [vmem:[%s2 + $0x8] sm:$0xff]
        %v328 = vld [vmem:[%s2 + $0x10] sm:$0xff]
        %v329 = vld [vmem:[%s2 + $0x18] sm:$0xff]
        %v330 = vld [vmem:[%s2 + $0x20] sm:$0xff]
        %v331 = vld [vmem:[%s2 + $0x28] sm:$0xff]
        %v332 = vld [vmem:[%s2 + $0x30] sm:$0xff]
        %v333 = vld [vmem:[%s2 + $0x38] sm:$0xff]
        %v334 = vld [vmem:[%s2 + $0x40] sm:$0xff]
        %v335 = vld [vmem:[%s2 + $0x48] sm:$0xff]
        %v336 = vld [vmem:[%s2 + $0x50] sm:$0xff]
        %v337 = vld [vmem:[%s2 + $0x58] sm:$0xff]
        %v338 = vld [vmem:[%s2 + $0x60] sm:$0xff]
        %v339 = vld [vmem:[%s2 + $0x68] sm:$0xff]
        %v340 = vld [vmem:[%s2 + $0x70] sm:$0xff]
        %v341 = vld [vmem:[%s2 + $0x78] sm:$0xff]
        %342 = vmatprep.subr.mxu0 0.0
        %343 = vmatpush1.msra.mxu0 %v326
        %344 = vmatprep.subr.mxu0 0.0
        %345 = vmatpush1.msra.mxu0 %v327
        %346 = vmatprep.subr.mxu0 0.0
        %347 = vmatpush1.msra.mxu0 %v328
        %348 = vmatprep.subr.mxu0 0.0
        %349 = vmatpush1.msra.mxu0 %v329
        %350 = vmatprep.subr.mxu0 0.0
        %351 = vmatpush1.msra.mxu0 %v330
        %352 = vmatprep.subr.mxu0 0.0
        %353 = vmatpush1.msra.mxu0 %v331
        %354 = vmatprep.subr.mxu0 0.0
        %355 = vmatpush1.msra.mxu0 %v332
        %356 = vmatprep.subr.mxu0 0.0
        %357 = vmatpush1.msra.mxu0 %v333
        %358 = vmatprep.subr.mxu0 0.0
        %359 = vmatpush1.msra.mxu0 %v334
        %360 = vmatprep.subr.mxu0 0.0
        %361 = vmatpush1.msra.mxu0 %v335
        %362 = vmatprep.subr.mxu0 0.0
        %363 = vmatpush1.msra.mxu0 %v336
        %364 = vmatprep.subr.mxu0 0.0
        %365 = vmatpush1.msra.mxu0 %v337
        %366 = vmatprep.subr.mxu0 0.0
        %367 = vmatpush1.msra.mxu0 %v338
        %368 = vmatprep.subr.mxu0 0.0
        %369 = vmatpush1.msra.mxu0 %v339
        %370 = vmatprep.subr.mxu0 0.0
        %371 = vmatpush1.msra.mxu0 %v340
        %372 = vmatprep.subr.mxu0 0.0
        %373 = vmatpush1.msra.mxu0 %v341
        %374 = vmatprep.subr.mxu0 0.0
        %375 = vmatpush1.msra.mxu0 0.0
        %376 = vmatprep.subr.mxu0 0.0
        %377 = vmatpush1.msra.mxu0 0.0
        %378 = vmatprep.subr.mxu0 0.0
        %379 = vmatpush1.msra.mxu0 0.0
        %380 = vmatprep.subr.mxu0 0.0
        %381 = vmatpush1.msra.mxu0 0.0
        %382 = vmatprep.subr.mxu0 0.0
        %383 = vmatpush1.msra.mxu0 0.0
        %384 = vmatprep.subr.mxu0 0.0
        %385 = vmatpush1.msra.mxu0 0.0
        %386 = vmatprep.subr.mxu0 0.0
        %387 = vmatpush1.msra.mxu0 0.0
        %388 = vmatprep.subr.mxu0 0.0
        %389 = vmatpush1.msra.mxu0 0.0
        %390 = vmatprep.subr.mxu0 0.0
        %391 = vmatpush1.msra.mxu0 0.0
        %392 = vmatprep.subr.mxu0 0.0
        %393 = vmatpush1.msra.mxu0 0.0
        %394 = vmatprep.subr.mxu0 0.0
        %395 = vmatpush1.msra.mxu0 0.0
        %396 = vmatprep.subr.mxu0 0.0
        %397 = vmatpush1.msra.mxu0 0.0
        %398 = vmatprep.subr.mxu0 0.0
        %399 = vmatpush1.msra.mxu0 0.0
        %400 = vmatprep.subr.mxu0 0.0
        %401 = vmatpush1.msra.mxu0 0.0
        %402 = vmatprep.subr.mxu0 0.0
        %403 = vmatpush1.msra.mxu0 0.0
        %404 = vmatprep.subr.mxu0 0.0
        %405 = vmatpush1.msra.mxu0 0.0
        %406 = vmatprep.mubr.f32.mxu0 0.0
        %407 = vmatmul.mubr.f32.gmra.mrb[0].mxu0 %v234
        %v408 = vpop.f32.mrb[0].mxu0
        %v409 = vadd.f32 0.0, %v408
        %v410 = vpop.f32.mrb[0].mxu0
        %411 = vmatprep.mubr.f32.mxu0 0.0
        %412 = vmatmul.mubr.f32.gmra.mrb[0].mxu0 %v235
        %v413 = vpop.f32.mrb[0].mxu0
        %v414 = vadd.f32 0.0, %v413
        %v415 = vpop.f32.mrb[0].mxu0
        %416 = vmatprep.mubr.f32.mxu0 0.0
        %417 = vmatmul.mubr.f32.gmra.mrb[0].mxu0 %v236
        %v418 = vpop.f32.mrb[0].mxu0
        %v419 = vadd.f32 0.0, %v418
        %v420 = vpop.f32.mrb[0].mxu0
        %421 = vmatprep.mubr.f32.mxu0 0.0
        %422 = vmatmul.mubr.f32.gmra.mrb[0].mxu0 %v237
        %v423 = vpop.f32.mrb[0].mxu0
        %v424 = vadd.f32 0.0, %v423
        %v425 = vpop.f32.mrb[0].mxu0
        %426 = vdwg.mxu0
        %427 = vmatprep.subr.mxu0 0.0
        %428 = vmatpush1.msra.mxu0 %v310
        %429 = vmatprep.subr.mxu0 0.0
        %430 = vmatpush1.msra.mxu0 %v311
        %431 = vmatprep.subr.mxu0 0.0
        %432 = vmatpush1.msra.mxu0 %v312
        %433 = vmatprep.subr.mxu0 0.0
        %434 = vmatpush1.msra.mxu0 %v313
        %435 = vmatprep.subr.mxu0 0.0
        %436 = vmatpush1.msra.mxu0 %v314
        %437 = vmatprep.subr.mxu0 0.0
        %438 = vmatpush1.msra.mxu0 %v315
        %439 = vmatprep.subr.mxu0 0.0
        %440 = vmatpush1.msra.mxu0 %v316
        %441 = vmatprep.subr.mxu0 0.0
        %442 = vmatpush1.msra.mxu0 %v317
        %443 = vmatprep.subr.mxu0 0.0
        %444 = vmatpush1.msra.mxu0 %v318
        %445 = vmatprep.subr.mxu0 0.0
        %446 = vmatpush1.msra.mxu0 %v319
        %447 = vmatprep.subr.mxu0 0.0
        %448 = vmatpush1.msra.mxu0 %v320
        %449 = vmatprep.subr.mxu0 0.0
        %450 = vmatpush1.msra.mxu0 %v321
        %451 = vmatprep.subr.mxu0 0.0
        %452 = vmatpush1.msra.mxu0 %v322
        %453 = vmatprep.subr.mxu0 0.0
        %454 = vmatpush1.msra.mxu0 %v323
        %455 = vmatprep.subr.mxu0 0.0
        %456 = vmatpush1.msra.mxu0 %v324
        %457 = vmatprep.subr.mxu0 0.0
        %458 = vmatpush1.msra.mxu0 %v325
        %459 = vmatprep.subr.mxu0 0.0
        %460 = vmatpush1.msra.mxu0 0.0
        %461 = vmatprep.subr.mxu0 0.0
        %462 = vmatpush1.msra.mxu0 0.0
        %463 = vmatprep.subr.mxu0 0.0
        %464 = vmatpush1.msra.mxu0 0.0
        %465 = vmatprep.subr.mxu0 0.0
        %466 = vmatpush1.msra.mxu0 0.0
        %467 = vmatprep.subr.mxu0 0.0
        %468 = vmatpush1.msra.mxu0 0.0
        %469 = vmatprep.subr.mxu0 0.0
        %470 = vmatpush1.msra.mxu0 0.0
        %471 = vmatprep.subr.mxu0 0.0
        %472 = vmatpush1.msra.mxu0 0.0
        %473 = vmatprep.subr.mxu0 0.0
        %474 = vmatpush1.msra.mxu0 0.0
        %475 = vmatprep.subr.mxu0 0.0
        %476 = vmatpush1.msra.mxu0 0.0
        %477 = vmatprep.subr.mxu0 0.0
        %478 = vmatpush1.msra.mxu0 0.0
        %479 = vmatprep.subr.mxu0 0.0
        %480 = vmatpush1.msra.mxu0 0.0
        %481 = vmatprep.subr.mxu0 0.0
        %482 = vmatpush1.msra.mxu0 0.0
        %483 = vmatprep.subr.mxu0 0.0
        %484 = vmatpush1.msra.mxu0 0.0
        %485 = vmatprep.subr.mxu0 0.0
        %486 = vmatpush1.msra.mxu0 0.0
        %487 = vmatprep.subr.mxu0 0.0
        %488 = vmatpush1.msra.mxu0 0.0
        %489 = vmatprep.subr.mxu0 0.0
        %490 = vmatpush1.msra.mxu0 0.0
        %491 = vmatprep.mubr.f32.mxu0 0.0
        %492 = vmatmul.mubr.f32.gmra.mrb[0].mxu0 %v229
        %v493 = vpop.f32.mrb[0].mxu0
        %v494 = vadd.f32 %v409, %v493
        %v495 = vpop.f32.mrb[0].mxu0
        %496 = vmatprep.mubr.f32.mxu0 0.0
        %497 = vmatmul.mubr.f32.gmra.mrb[0].mxu0 %v230
        %v498 = vpop.f32.mrb[0].mxu0
        %v499 = vadd.f32 %v414, %v498
        %v500 = vpop.f32.mrb[0].mxu0
        %501 = vmatprep.mubr.f32.mxu0 0.0
        %502 = vmatmul.mubr.f32.gmra.mrb[0].mxu0 %v231
        %v503 = vpop.f32.mrb[0].mxu0
        %v504 = vadd.f32 %v419, %v503
        %v505 = vpop.f32.mrb[0].mxu0
        %506 = vmatprep.mubr.f32.mxu0 0.0
        %507 = vmatmul.mubr.f32.gmra.mrb[0].mxu0 %v232
        %v508 = vpop.f32.mrb[0].mxu0
        %v509 = vadd.f32 %v424, %v508
        %v510 = vpop.f32.mrb[0].mxu0
        %511 = vdwg.mxu0
        %v512 = vmul.f32 %v306, %v494
        %v513 = vmul.f32 %v307, %v499
        %v514 = vmul.f32 %v308, %v504
        %v515 = vmul.f32 %v309, %v509
        %v516 = vmul.f32 %v306, %v286
        %v517 = vmul.f32 %v307, %v287
        %v518 = vmul.f32 %v308, %v288
        %v519 = vmul.f32 %v309, %v289
        %v520 = vld [vmem:[%s3] sm:$0x1]
        %v522 = vlaneseq
        %v523 = vshrl.u32 %v522, 7
        %v524 = vsub.s32 0, %v523
        %v525 = vrot.slane %v520, %v524
        %v527 = vmul.f32 %v516, %v525
        %v528 = vmul.f32 %v517, %v525
        %v529 = vmul.f32 %v518, %v525
        %v530 = vmul.f32 %v519, %v525
        %v531 = vsub.f32 %v512, %v527
        %v532 = vsub.f32 %v513, %v528
        %v533 = vsub.f32 %v514, %v529
        %v534 = vsub.f32 %v515, %v530
        %v535 = vld [vmem:[%s4] sm:$0x1]
        %v537 = vlaneseq
        %v538 = vshrl.u32 %v537, 7
        %v539 = vsub.s32 0, %v538
        %v540 = vrot.slane %v535, %v539
        %v542 = vadd.f32 %v531, %v540
        %v543 = vadd.f32 %v532, %v540
        %v544 = vadd.f32 %v533, %v540
        %v545 = vadd.f32 %v534, %v540
        %546 = vst [vmem:[%s220] sm:$0xff] %v542
        %547 = vst [vmem:[%s220 + $0x8] sm:$0xff] %v543
        %548 = vst [vmem:[%s220 + $0x10] sm:$0xff] %v544
        %549 = vst [vmem:[%s220 + $0x18] sm:$0xff] %v545
        %s550 = sand.u32 %s137, 1
        %s551 = scalar_lea.sflag [#allocation3], %s550
        %s552 = sand.u32 %s137, 1
        %s553 = smul.addr %s552, 32
        %s554 = scalar_lea.vmem [#allocation2], %s553
        // Predicated region
        $region41: #{patch_merging.1} parent=39 // pred_check
          %p555 = pneg %p147
        $region42: #{patch_merging.1} parent=39 // pred_check_branch
          %557 = sbr.rel (%p555) target = $region44
        $region43: #{patch_merging.1} parent=39 // pred_region
          %s558 = smul.u32 4, %s19
          %s560 = ssub.s32 512, 512
          %561 = vsyncadd %s551, %s560
          %s562 = smul.addr %s558, 128
          %s563 = scalar_lea.hbm %s5, %s562
          %s564 = sshll.u32 %s554, 4
          %s565 = int_to_ptr.vmem [resolvable:$true] %s564
          %570 = dma.vmem_to_hbm [thread:$0]  %s565, 512, %s563, %s551, 128, 128, 8
        $region44: #{patch_merging.1} parent=39 // pred_fallthru
          _
      $region40: #{patch_merging.1} parent=5 // pred_fallthru
        _
      %p571 = scmp.le.s32.totalorder 2, %s14
      // Predicated region
      $region45: #{patch_merging.1} parent=5 // pred_check
        %p572 = pneg %p571
      $region46: #{patch_merging.1} parent=5 // pred_check_branch
        %574 = sbr.rel (%p572) target = $region48
      $region47: #{patch_merging.1} parent=5 // pred_region
        %s575 = ssub.s32 %s14, 2
        // Predicated region
        $region49: #{patch_merging.1} parent=47 // pred_check
          %p576 = pneg %p153
        $region50: #{patch_merging.1} parent=47 // pred_check_branch
          %578 = sbr.rel (%p576) target = $region52
        $region51: #{patch_merging.1} parent=47 // pred_region
          %s579 = sand.u32 %s138, 1
          %s580 = scalar_lea.sflag [#allocation3], %s579
          %s581 = sand.u32 %s138, 1
          %s582 = smul.addr %s581, 32
          %s583 = scalar_lea.vmem [#allocation2], %s582
          %584 = dma.done %s580, 512
        $region52: #{patch_merging.1} parent=47 // pred_fallthru
          _
      $region48: #{patch_merging.1} parent=5 // pred_fallthru
        _
    $region6: #{patch_merging.1} parent=1 // loop_footer
      %s18 = sadd.s32 1, %s14
    $region7: #{patch_merging.1} parent=1 // loop_footer_branch
      %13 = sbr.rel target = $region3
    $region8: #{patch_merging.1} parent=1 // loop_exit
      _
    %585 = vsyncpa [#allocation3], 1
    %s586 = scalar_lea.sflag [#allocation3], 1
    %587 = vsyncpa %s586, 1

</llo_original>
